<compile_context>
chip_gen: v7x
topology: tpu7x:2x2x1
jax: 0.10.0
libtpu: 0.0.40
codegen_flags: <defaults>
</compile_context>

<pallas_src>
import jax
import jax.numpy as jnp
from jax import lax
from jax.experimental import pallas as pl
from jax.experimental.pallas import tpu as pltpu


def _round_up(a, m):
    return -(-a // m) * m


def _cdiv(a, d):
    return -(-a // d)


def _bilinear_attn_kernel(x_ref, y_ref, mb_ref, wt_ref, b_ref, out_ref, s_ref):
    """One grid step processes a block of `bb` batches.
        x_ref  : (bb, Lp,  H)   compute dtype (bf16/f32)   evidences_outputs
        y_ref  : (bb, Lyp, H)   compute dtype              paragraph_outputs
        mb_ref : (bb, 1,  Lp)   compute dtype, additive mask bias (-1e5 on padding)
        wt_ref : (H, H)         compute dtype, W^T (grid-invariant)
        b_ref  : (1, H)         f32 bias (grid-invariant)
        out_ref: (bb, Lyp, Lp)  alpha = softmax(xWy, dim=-1)
        s_ref  : (bb, Lyp, Lp)  f32 VMEM scratch for the raw scores
    """
    bb = out_ref.shape[0]

    # Per-batch Linear + bilinear scores.  Writing each score tile straight into the
    # f32 scratch bounds the live range of Wy (no (bb*Lyp, H) product is held across
    # the whole loop).  The scores matmul contracts the last dims (q @ k^T pattern,
    # same as flash-attention) so no in-kernel transpose is materialized.
    for i in range(bb):
        wy = jnp.dot(y_ref[i], wt_ref[...],
                     preferred_element_type=jnp.float32) + b_ref[...]
        wy = wy.astype(y_ref.dtype)
        s_ref[i] = lax.dot_general(wy, x_ref[i], (((1,), (1,)), ((), ())),
                                   preferred_element_type=jnp.float32)

    # Slab-wide mask + numerically-stable softmax + one lane-dense store over the
    # whole (bb, Lyp, Lp) block.
    s = s_ref[...] + mb_ref[...].astype(jnp.float32)          # additive mask bias
    m = jnp.max(s, axis=-1, keepdims=True)
    e = jnp.exp(s - m)
    denom = jnp.sum(e, axis=-1, keepdims=True)
    approx = jnp.dtype(out_ref.dtype) != jnp.dtype(jnp.float32)
    out_ref[...] = (e * pl.reciprocal(denom, approx=approx)).astype(out_ref.dtype)


def bilinear_seq_attn(x, y, x_mask, w, b, *, block_b=8,
                      compute_dtype=jnp.bfloat16, out_dtype=jnp.bfloat16,
                      trim_output=True):
    """x: (B, L, H), y: (B, Ly, H), x_mask: (B, L) float with 1 = padding,
    w: (H, H) PyTorch Linear weight (out=x_size, in=y_size), b: (H,).
    Returns alpha: (B, Ly, L) (padded (Bp, Lyp, Lp) if trim_output=False, which
    saves one HBM slice pass for consumers that can handle the padded layout)."""
    x = jnp.asarray(x)
    y = jnp.asarray(y)
    B, L, H = x.shape
    Ly = y.shape[1]

    cdt = jnp.dtype(compute_dtype)
    odt = jnp.dtype(out_dtype)
    sz_c, sz_o = cdt.itemsize, odt.itemsize

    # ---- lane/sublane-aligned block geometry --------------------------------------
    Lp = _round_up(L, 128)                        # lane-dense scores/softmax/stores
    Lyp = _round_up(Ly, 16 if sz_o == 2 else 8)   # bf16 out -> native (16,128) tile

    # ---- per-generation sizing ------------------------------------------------------
    try:                                           # best-effort hardware query
        vmem_cap = int(pltpu.get_tpu_info().vmem_capacity_bytes)
    except Exception:
        vmem_cap = 128 * 1024 * 1024
    two_tensorcores = vmem_cap <= 64 * 1024 * 1024    # v7x: 64 MiB VMEM, 2 TCs/chip

    single_buf_w = H >= 256                        # single-buffer invariant weight

    def step_vmem(bb):                             # double-buffered blocks + scratch
        return (2 * bb * (Lp * H + Lyp * H + Lp) * sz_c       # x, y, mask bias
                + 2 * bb * Lyp * Lp * sz_o                    # alpha output
                + bb * Lyp * Lp * 4                           # f32 scores scratch
                + (1 if single_buf_w else 2) * H * H * sz_c   # weight
                + 2 * H * 4)                                  # bias

    budget = min(vmem_cap // 2, 64 * 1024 * 1024)
    bb = max(1, min(block_b, B))
    while bb > 1 and step_vmem(bb) > budget:
        bb //= 2
    if two_tensorcores:
        # keep an even number (>= 2) of grid steps so both TensorCores get equal work
        while bb > 1 and (_cdiv(B, bb) < 2 or _cdiv(B, bb) % 2):
            bb //= 2
    Bp = _cdiv(B, bb) * bb

    # ---- input plumbing: cast / pad only when actually needed ----------------------
    xq = x if x.dtype == cdt else x.astype(cdt)
    if Bp != B or Lp != L:
        xq = jnp.pad(xq, ((0, Bp - B), (0, Lp - L), (0, 0)))
    yq = y if y.dtype == cdt else y.astype(cdt)
    if Bp != B or Lyp != Ly:
        yq = jnp.pad(yq, ((0, Bp - B), (0, Lyp - Ly), (0, 0)))
    # additive mask bias (1 = padding -> -1e5); padded columns / batches count as padding
    mb = (jnp.asarray(x_mask, dtype=jnp.float32)
          * jnp.float32(-100000.0)).reshape(B, 1, L)
    if Bp != B or Lp != L:
        mb = jnp.pad(mb, ((0, Bp - B), (0, 0), (0, Lp - L)),
                     constant_values=-100000.0)
    mb = mb.astype(cdt)

    wt = jnp.asarray(w).T.astype(cdt)                   # (y_size, x_size) = W^T
    bias = jnp.asarray(b, jnp.float32).reshape(1, H)    # bias kept in f32

    inv_kwargs = {"pipeline_mode": pl.Buffered(1)} if single_buf_w else {}
    grid = (Bp // bb,)
    vmem_limit = int(min(max(step_vmem(bb) * 1.25 + (4 << 20), 32 << 20),
                         vmem_cap * 9 // 10))

    out = pl.pallas_call(
        _bilinear_attn_kernel,
        out_shape=jax.ShapeDtypeStruct((Bp, Lyp, Lp), odt),
        grid_spec=pltpu.PrefetchScalarGridSpec(
            num_scalar_prefetch=0,
            grid=grid,
            in_specs=[
                pl.BlockSpec((bb, Lp, H), lambda i: (i, 0, 0)),
                pl.BlockSpec((bb, Lyp, H), lambda i: (i, 0, 0)),
                pl.BlockSpec((bb, 1, Lp), lambda i: (i, 0, 0)),
                pl.BlockSpec((H, H), lambda i: (0, 0), **inv_kwargs),   # invariant W^T
                pl.BlockSpec((1, H), lambda i: (0, 0), **inv_kwargs),   # invariant bias
            ],
            out_specs=pl.BlockSpec((bb, Lyp, Lp), lambda i: (i, 0, 0)),
            scratch_shapes=[pltpu.VMEM((bb, Lyp, Lp), jnp.float32)],
        ),
        compiler_params=pltpu.CompilerParams(
            dimension_semantics=("parallel",),
            vmem_limit_bytes=vmem_limit),
    )(xq, yq, mb, wt, bias)

    if trim_output and (Bp != B or Lyp != Ly or Lp != L):
        out = out[:B, :Ly, :L]
    return out


def _reference(x, y, x_mask, w, b):
    """Pure-JAX f32 reference mirroring the PyTorch BilinearSeqAttn forward exactly."""
    wy = jnp.einsum("bld,hd->blh", y, w) + b            # Linear(y): (B, Ly, H)
    xwy = jnp.einsum("bqh,blh->bql", x, wy)             # x.bmm(Wy^T): (B, L, Ly)
    xwy = jnp.transpose(xwy, (0, 2, 1))                 # (B, Ly, L)
    m = x_mask[:, None, :]
    xwy = xwy * (1.0 - m) + m * (-100000.0)
    return jax.nn.softmax(xwy, axis=-1)


if __name__ == "__main__":
    # Small shapes consistent with the Encoder attention: batch=2, evidence len=16,
    # paragraph len (len_sc)=8, hidden=32 (x_size == y_size == H).
    B, L, Ly, H = 2, 16, 8, 32

    key = jax.random.PRNGKey(0)
    kx, ky, kw, kb = jax.random.split(key, 4)

    x = jax.random.normal(kx, (B, L, H), jnp.float32)
    y = jax.random.normal(ky, (B, Ly, H), jnp.float32)

    # Deterministic Linear(y_size, x_size) params (PyTorch-style uniform +-1/sqrt(fan_in)).
    bound = 1.0 / (H ** 0.5)
    w = jax.random.uniform(kw, (H, H), jnp.float32, -bound, bound)   # (x_size, y_size)
    b = jax.random.uniform(kb, (H,), jnp.float32, -bound, bound)

    # Padding mask: 1 for padding, 0 for real tokens (last 3 positions padded).
    x_mask = (jnp.arange(L)[None, :] >= (L - 3)).astype(jnp.float32)
    x_mask = jnp.broadcast_to(x_mask, (B, L))

    ref = _reference(x, y, x_mask, w, b)

    # Full-precision MXU path with f32 output (exact reciprocal): tight check.
    alpha_f32 = bilinear_seq_attn(x, y, x_mask, w, b,
                                  compute_dtype=jnp.float32, out_dtype=jnp.float32)
    jax.block_until_ready(alpha_f32)
    assert alpha_f32.shape == (B, Ly, L)
    assert jnp.allclose(alpha_f32, ref, atol=5e-3, rtol=5e-3), "f32 path mismatch vs reference"

    # Default fast path (bf16 MXU inputs + bf16 output, f32 accumulation): looser tolerance.
    alpha = bilinear_seq_attn(x, y, x_mask, w, b)
    jax.block_until_ready(alpha)
    assert alpha.shape == (B, Ly, L)
    assert jnp.allclose(alpha.astype(jnp.float32), ref, atol=5e-2, rtol=5e-2), \
        "bf16 path mismatch vs reference"

    print("KERNEL_OK")
</pallas_src>

<mosaic_0001>
module attributes {stable_mosaic.version = 11 : i64} {
  func.func @_bilinear_attn_kernel(%arg0: i32, %arg1: memref<2x128x32xf32, #tpu.memory_space<vmem>>, %arg2: memref<2x8x32xf32, #tpu.memory_space<vmem>>, %arg3: memref<2x1x128xf32, #tpu.memory_space<vmem>>, %arg4: memref<32x32xf32, #tpu.memory_space<vmem>>, %arg5: memref<1x32xf32, #tpu.memory_space<vmem>>, %arg6: memref<2x8x128xf32, #tpu.memory_space<vmem>>, %arg7: memref<2x8x128xf32, #tpu.memory_space<vmem>>) attributes {dimension_semantics = [#tpu.dimension_semantics<parallel>], iteration_bounds = array<i64: 1>, scalar_prefetch = 0 : i64, scratch_operands = 1 : i64, tpu.core_type = #tpu.core_type<tc>, window_params = [{transform_indices = @transform_0, window_bounds = array<i64: 2, 128, 32>}, {transform_indices = @transform_1, window_bounds = array<i64: 2, 8, 32>}, {transform_indices = @transform_2, window_bounds = array<i64: 2, 1, 128>}, {pipeline_mode = #tpu.pipeline_mode<synchronous>, transform_indices = @transform_3, window_bounds = array<i64: 32, 32>}, {pipeline_mode = #tpu.pipeline_mode<synchronous>, transform_indices = @transform_4, window_bounds = array<i64: 1, 32>}, {transform_indices = @transform_5, window_bounds = array<i64: 2, 8, 128>}]} {
    %c0 = arith.constant 0 : index
    %c0_0 = arith.constant 0 : index
    %c0_1 = arith.constant 0 : index
    %0 = vector.load %arg2[%c0, %c0_0, %c0_1] : memref<2x8x32xf32, #tpu.memory_space<vmem>>, vector<1x8x32xf32>
    %1 = vector.shape_cast %0 : vector<1x8x32xf32> to vector<8x32xf32>
    %c0_2 = arith.constant 0 : index
    %c0_3 = arith.constant 0 : index
    %2 = vector.load %arg4[%c0_2, %c0_3] : memref<32x32xf32, #tpu.memory_space<vmem>>, vector<32x32xf32>
    %cst = arith.constant dense<0.000000e+00> : vector<8x32xf32>
    %3 = tpu.matmul %1, %2, %cst {dimension_numbers = #tpu.dot_dimension_numbers<[1], [0], [0], [1], [0, 0, 1, 1], [], []>} : vector<8x32xf32>, vector<32x32xf32>, vector<8x32xf32> -> vector<8x32xf32>
    %c0_4 = arith.constant 0 : index
    %c0_5 = arith.constant 0 : index
    %4 = vector.load %arg5[%c0_4, %c0_5] : memref<1x32xf32, #tpu.memory_space<vmem>>, vector<1x32xf32>
    %5 = vector.broadcast %4 : vector<1x32xf32> to vector<8x32xf32>
    %6 = arith.addf %3, %5 : vector<8x32xf32>
    %c0_6 = arith.constant 0 : index
    %c0_7 = arith.constant 0 : index
    %c0_8 = arith.constant 0 : index
    %7 = vector.load %arg1[%c0_6, %c0_7, %c0_8] : memref<2x128x32xf32, #tpu.memory_space<vmem>>, vector<1x128x32xf32>
    %8 = vector.shape_cast %7 : vector<1x128x32xf32> to vector<128x32xf32>
    %cst_9 = arith.constant dense<0.000000e+00> : vector<8x128xf32>
    %9 = tpu.matmul %6, %8, %cst_9 {dimension_numbers = #tpu.dot_dimension_numbers<[1], [1], [0], [0], [0, 0, 1, 0], [], []>} : vector<8x32xf32>, vector<128x32xf32>, vector<8x128xf32> -> vector<8x128xf32>
    %c0_10 = arith.constant 0 : index
    %c0_11 = arith.constant 0 : index
    %c0_12 = arith.constant 0 : index
    %10 = vector.load %arg7[%c0_10, %c0_11, %c0_12] : memref<2x8x128xf32, #tpu.memory_space<vmem>>, vector<1x8x128xf32>
    %11 = vector.shape_cast %10 : vector<1x8x128xf32> to vector<8x128xf32>
    %12 = vector.shape_cast %9 : vector<8x128xf32> to vector<1x8x128xf32>
    tpu.vector_store %arg7[%c0_10, %c0_11, %c0_12], %12 {strides = array<i32>} : memref<2x8x128xf32, #tpu.memory_space<vmem>>, vector<1x8x128xf32>,
    %c1 = arith.constant 1 : index
    %c0_13 = arith.constant 0 : index
    %c0_14 = arith.constant 0 : index
    %13 = vector.load %arg2[%c1, %c0_13, %c0_14] : memref<2x8x32xf32, #tpu.memory_space<vmem>>, vector<1x8x32xf32>
    %14 = vector.shape_cast %13 : vector<1x8x32xf32> to vector<8x32xf32>
    %c0_15 = arith.constant 0 : index
    %c0_16 = arith.constant 0 : index
    %15 = vector.load %arg4[%c0_15, %c0_16] : memref<32x32xf32, #tpu.memory_space<vmem>>, vector<32x32xf32>
    %cst_17 = arith.constant dense<0.000000e+00> : vector<8x32xf32>
    %16 = tpu.matmul %14, %15, %cst_17 {dimension_numbers = #tpu.dot_dimension_numbers<[1], [0], [0], [1], [0, 0, 1, 1], [], []>} : vector<8x32xf32>, vector<32x32xf32>, vector<8x32xf32> -> vector<8x32xf32>
    %c0_18 = arith.constant 0 : index
    %c0_19 = arith.constant 0 : index
    %17 = vector.load %arg5[%c0_18, %c0_19] : memref<1x32xf32, #tpu.memory_space<vmem>>, vector<1x32xf32>
    %18 = vector.broadcast %17 : vector<1x32xf32> to vector<8x32xf32>
    %19 = arith.addf %16, %18 : vector<8x32xf32>
    %c1_20 = arith.constant 1 : index
    %c0_21 = arith.constant 0 : index
    %c0_22 = arith.constant 0 : index
    %20 = vector.load %arg1[%c1_20, %c0_21, %c0_22] : memref<2x128x32xf32, #tpu.memory_space<vmem>>, vector<1x128x32xf32>
    %21 = vector.shape_cast %20 : vector<1x128x32xf32> to vector<128x32xf32>
    %cst_23 = arith.constant dense<0.000000e+00> : vector<8x128xf32>
    %22 = tpu.matmul %19, %21, %cst_23 {dimension_numbers = #tpu.dot_dimension_numbers<[1], [1], [0], [0], [0, 0, 1, 0], [], []>} : vector<8x32xf32>, vector<128x32xf32>, vector<8x128xf32> -> vector<8x128xf32>
    %c1_24 = arith.constant 1 : index
    %c0_25 = arith.constant 0 : index
    %c0_26 = arith.constant 0 : index
    %23 = vector.load %arg7[%c1_24, %c0_25, %c0_26] : memref<2x8x128xf32, #tpu.memory_space<vmem>>, vector<1x8x128xf32>
    %24 = vector.shape_cast %23 : vector<1x8x128xf32> to vector<8x128xf32>
    %25 = vector.shape_cast %22 : vector<8x128xf32> to vector<1x8x128xf32>
    tpu.vector_store %arg7[%c1_24, %c0_25, %c0_26], %25 {strides = array<i32>} : memref<2x8x128xf32, #tpu.memory_space<vmem>>, vector<1x8x128xf32>,
    %c0_27 = arith.constant 0 : index
    %c0_28 = arith.constant 0 : index
    %c0_29 = arith.constant 0 : index
    %26 = vector.load %arg7[%c0_27, %c0_28, %c0_29] : memref<2x8x128xf32, #tpu.memory_space<vmem>>, vector<2x8x128xf32>
    %c0_30 = arith.constant 0 : index
    %c0_31 = arith.constant 0 : index
    %c0_32 = arith.constant 0 : index
    %27 = vector.load %arg3[%c0_30, %c0_31, %c0_32] : memref<2x1x128xf32, #tpu.memory_space<vmem>>, vector<2x1x128xf32>
    %28 = vector.broadcast %27 : vector<2x1x128xf32> to vector<2x8x128xf32>
    %29 = arith.addf %26, %28 : vector<2x8x128xf32>
    %cst_33 = arith.constant dense<0xFF800000> : vector<2x8xf32>
    %30 = vector.multi_reduction <maximumf>, %29, %cst_33 [2] : vector<2x8x128xf32> to vector<2x8xf32>
    %31 = vector.shape_cast %30 : vector<2x8xf32> to vector<2x8x1xf32>
    %32 = vector.broadcast %31 : vector<2x8x1xf32> to vector<2x8x128xf32>
    %33 = arith.subf %29, %32 : vector<2x8x128xf32>
    %34 = math.exp %33 : vector<2x8x128xf32>
    %cst_34 = arith.constant dense<0.000000e+00> : vector<2x8xf32>
    %35 = vector.multi_reduction <add>, %34, %cst_34 [2] : vector<2x8x128xf32> to vector<2x8xf32>
    %36 = vector.shape_cast %35 : vector<2x8xf32> to vector<2x8x1xf32>
    %37 = tpu.reciprocal %36 : vector<2x8x1xf32> -> vector<2x8x1xf32>
    %38 = vector.broadcast %37 : vector<2x8x1xf32> to vector<2x8x128xf32>
    %39 = arith.mulf %34, %38 : vector<2x8x128xf32>
    %c0_35 = arith.constant 0 : index
    %c0_36 = arith.constant 0 : index
    %c0_37 = arith.constant 0 : index
    %40 = vector.load %arg6[%c0_35, %c0_36, %c0_37] : memref<2x8x128xf32, #tpu.memory_space<vmem>>, vector<2x8x128xf32>
    tpu.vector_store %arg6[%c0_35, %c0_36, %c0_37], %39 {strides = array<i32>} : memref<2x8x128xf32, #tpu.memory_space<vmem>>, vector<2x8x128xf32>,
    return
  }
  func.func @transform_0(%arg0: i32) -> (i32, i32, i32) {
    %c0_i32 = arith.constant 0 : i32
    %c0_i32_0 = arith.constant 0 : i32
    %c0_i32_1 = arith.constant 0 : i32
    return %arg0, %c0_i32, %c0_i32_0 : i32, i32, i32
  }
  func.func @transform_1(%arg0: i32) -> (i32, i32, i32) {
    %c0_i32 = arith.constant 0 : i32
    %c0_i32_0 = arith.constant 0 : i32
    %c0_i32_1 = arith.constant 0 : i32
    return %arg0, %c0_i32, %c0_i32_0 : i32, i32, i32
  }
  func.func @transform_2(%arg0: i32) -> (i32, i32, i32) {
    %c0_i32 = arith.constant 0 : i32
    %c0_i32_0 = arith.constant 0 : i32
    %c0_i32_1 = arith.constant 0 : i32
    return %arg0, %c0_i32, %c0_i32_0 : i32, i32, i32
  }
  func.func @transform_3(%arg0: i32) -> (i32, i32) {
    %c0_i32 = arith.constant 0 : i32
    %c0_i32_0 = arith.constant 0 : i32
    %c0_i32_1 = arith.constant 0 : i32
    return %c0_i32, %c0_i32_0 : i32, i32
  }
  func.func @transform_4(%arg0: i32) -> (i32, i32) {
    %c0_i32 = arith.constant 0 : i32
    %c0_i32_0 = arith.constant 0 : i32
    %c0_i32_1 = arith.constant 0 : i32
    return %c0_i32, %c0_i32_0 : i32, i32
  }
  func.func @transform_5(%arg0: i32) -> (i32, i32, i32) {
    %c0_i32 = arith.constant 0 : i32
    %c0_i32_0 = arith.constant 0 : i32
    %c0_i32_1 = arith.constant 0 : i32
    return %arg0, %c0_i32, %c0_i32_0 : i32, i32, i32
  }
}

</mosaic_0001>

<llo_original>
// kernel: tpu_custom_call.1
$region0: #{tpu_custom_call.1}
  #allocation0 [shape = 'u32[]', space=smem, size = 0x4, offset = 0x4, fixed_abs, tag = 'smem constant byte address 0x4 - core index']
  #allocation1 [shape = 'u32[144,128]{1,0:T(1,128)}', space=vmem, size = 0x12000, scoped, tag = 'internal scratch']
  #allocation2 [shape = 'f32[2,8,128]{2,1,0:T(8,128)}', space=vmem, size = 0x2000, scoped, tag = 'scratch operand']
  %s0 = inlined_call_operand.vmem [shape: f32[2,128,32], index: 0, kind: input, shape index: {}]
  %s1 = inlined_call_operand.vmem [shape: f32[2,8,32], index: 1, kind: input, shape index: {}]
  %s2 = inlined_call_operand.vmem [shape: f32[2,1,128], index: 2, kind: input, shape index: {}]
  %s3 = inlined_call_operand.vmem [shape: f32[32,32], index: 3, kind: input, shape index: {}]
  %s4 = inlined_call_operand.vmem [shape: f32[1,32], index: 4, kind: input, shape index: {}]
  %s5 = inlined_call_operand.hbm [shape: f32[2,8,128], index: 5, kind: output, shape index: {}]
  %s6 = sld [smem:[#allocation0]]
  $region30: #{tpu_custom_call.1} parent=0
    _
  %s8 = ssub.s32 1, %s6
  %s9 = scalar_select 0, %s8, %s6
  $region1: #{tpu_custom_call.1} parent=0
    #allocation3 [shape = 'u8[8192]{0}', space=vmem, size = 0x2000, scoped, tag = 'output window, operand 0, single buffered']
    #allocation4 [shape = 's32[1]{0}', space=sflag, size = 0x4, scoped, tag = 'scoped memory for tpu_custom_call.1']
    %10 = vsyncpa [#allocation4], 0
    // Predicated region
    $region2: #{tpu_custom_call.1} parent=1 // pred_check
      _
    $region3: #{tpu_custom_call.1} parent=1 // pred_check_branch
      %12 = sbr.rel (0) target = $region5
    $region4: #{tpu_custom_call.1} parent=1 // pred_region
      _
    $region5: #{tpu_custom_call.1} parent=1 // pred_fallthru
      _
    // Predicated region
    $region6: #{tpu_custom_call.1} parent=1 // pred_check
      _
    $region7: #{tpu_custom_call.1} parent=1 // pred_check_branch
      %14 = sbr.rel (0) target = $region9
    $region8: #{tpu_custom_call.1} parent=1 // pred_region
      _
    $region9: #{tpu_custom_call.1} parent=1 // pred_fallthru
      _
    // Predicated region
    $region10: #{tpu_custom_call.1} parent=1 // pred_check
      _
    $region11: #{tpu_custom_call.1} parent=1 // pred_check_branch
      %16 = sbr.rel (0) target = $region13
    $region12: #{tpu_custom_call.1} parent=1 // pred_region
      _
    $region13: #{tpu_custom_call.1} parent=1 // pred_fallthru
      _
    // Predicated region
    $region14: #{tpu_custom_call.1} parent=1 // pred_check
      _
    $region15: #{tpu_custom_call.1} parent=1 // pred_check_branch
      %18 = sbr.rel (0) target = $region17
    $region16: #{tpu_custom_call.1} parent=1 // pred_region
      _
    $region17: #{tpu_custom_call.1} parent=1 // pred_fallthru
      _
    // Predicated region
    $region18: #{tpu_custom_call.1} parent=1 // pred_check
      _
    $region19: #{tpu_custom_call.1} parent=1 // pred_check_branch
      %20 = sbr.rel (0) target = $region21
    $region20: #{tpu_custom_call.1} parent=1 // pred_region
      _
    $region21: #{tpu_custom_call.1} parent=1 // pred_fallthru
      _
    %v21 = vld [vmem:[%s1] sm:$0xff]
    %v22 = vld [vmem:[%s3] sm:$0xff]
    %v23 = vld [vmem:[%s3 + $0x8] sm:$0xff]
    %v24 = vld [vmem:[%s3 + $0x10] sm:$0xff]
    %v25 = vld [vmem:[%s3 + $0x18] sm:$0xff]
    %v26 = vld [vmem:[%s4] sm:$0x1]
    %v28 = vlaneseq
    %v29 = vshrl.u32 %v28, 7
    %v30 = vsub.s32 0, %v29
    %v31 = vrot.slane %v26, %v30
    %vm33 = vcmask 261120
    %v35 = vsel %vm33, %v21, 0
    %37 = vmatprep.subr.mxu0 0.0
    %38 = vmatpush1.msra.mxu0 %v22
    %39 = vmatprep.subr.mxu0 0.0
    %40 = vmatpush1.msra.mxu0 %v23
    %41 = vmatprep.subr.mxu0 0.0
    %42 = vmatpush1.msra.mxu0 %v24
    %43 = vmatprep.subr.mxu0 0.0
    %44 = vmatpush1.msra.mxu0 %v25
    %45 = vmatprep.subr.mxu0 0.0
    %46 = vmatpush1.msra.mxu0 0.0
    %47 = vmatprep.subr.mxu0 0.0
    %48 = vmatpush1.msra.mxu0 0.0
    %49 = vmatprep.subr.mxu0 0.0
    %50 = vmatpush1.msra.mxu0 0.0
    %51 = vmatprep.subr.mxu0 0.0
    %52 = vmatpush1.msra.mxu0 0.0
    %53 = vmatprep.subr.mxu0 0.0
    %54 = vmatpush1.msra.mxu0 0.0
    %55 = vmatprep.subr.mxu0 0.0
    %56 = vmatpush1.msra.mxu0 0.0
    %57 = vmatprep.subr.mxu0 0.0
    %58 = vmatpush1.msra.mxu0 0.0
    %59 = vmatprep.subr.mxu0 0.0
    %60 = vmatpush1.msra.mxu0 0.0
    %61 = vmatprep.subr.mxu0 0.0
    %62 = vmatpush1.msra.mxu0 0.0
    %63 = vmatprep.subr.mxu0 0.0
    %64 = vmatpush1.msra.mxu0 0.0
    %65 = vmatprep.subr.mxu0 0.0
    %66 = vmatpush1.msra.mxu0 0.0
    %67 = vmatprep.subr.mxu0 0.0
    %68 = vmatpush1.msra.mxu0 0.0
    %69 = vmatprep.subr.mxu0 0.0
    %70 = vmatpush1.msra.mxu0 0.0
    %71 = vmatprep.subr.mxu0 0.0
    %72 = vmatpush1.msra.mxu0 0.0
    %73 = vmatprep.subr.mxu0 0.0
    %74 = vmatpush1.msra.mxu0 0.0
    %75 = vmatprep.subr.mxu0 0.0
    %76 = vmatpush1.msra.mxu0 0.0
    %77 = vmatprep.subr.mxu0 0.0
    %78 = vmatpush1.msra.mxu0 0.0
    %79 = vmatprep.subr.mxu0 0.0
    %80 = vmatpush1.msra.mxu0 0.0
    %81 = vmatprep.subr.mxu0 0.0
    %82 = vmatpush1.msra.mxu0 0.0
    %83 = vmatprep.subr.mxu0 0.0
    %84 = vmatpush1.msra.mxu0 0.0
    %85 = vmatprep.subr.mxu0 0.0
    %86 = vmatpush1.msra.mxu0 0.0
    %87 = vmatprep.subr.mxu0 0.0
    %88 = vmatpush1.msra.mxu0 0.0
    %89 = vmatprep.subr.mxu0 0.0
    %90 = vmatpush1.msra.mxu0 0.0
    %91 = vmatprep.subr.mxu0 0.0
    %92 = vmatpush1.msra.mxu0 0.0
    %93 = vmatprep.subr.mxu0 0.0
    %94 = vmatpush1.msra.mxu0 0.0
    %95 = vmatprep.subr.mxu0 0.0
    %96 = vmatpush1.msra.mxu0 0.0
    %97 = vmatprep.subr.mxu0 0.0
    %98 = vmatpush1.msra.mxu0 0.0
    %99 = vmatprep.subr.mxu0 0.0
    %100 = vmatpush1.msra.mxu0 0.0
    %101 = vmatprep.mubr.f32.mxu0 0.0
    %102 = vmatmul.mubr.f32.gmra.mrb[0].mxu0 %v35
    %v103 = vpop.f32.mrb[0].mxu0
    %v104 = vadd.f32 %v31, %v103
    %v105 = vpop.f32.mrb[0].mxu0
    %106 = vdwg.mxu0
    %v107 = vld [vmem:[%s0] sm:$0xff]
    %v108 = vld [vmem:[%s0 + $0x8] sm:$0xff]
    %v109 = vld [vmem:[%s0 + $0x10] sm:$0xff]
    %v110 = vld [vmem:[%s0 + $0x18] sm:$0xff]
    %v111 = vld [vmem:[%s0 + $0x20] sm:$0xff]
    %v112 = vld [vmem:[%s0 + $0x28] sm:$0xff]
    %v113 = vld [vmem:[%s0 + $0x30] sm:$0xff]
    %v114 = vld [vmem:[%s0 + $0x38] sm:$0xff]
    %v115 = vld [vmem:[%s0 + $0x40] sm:$0xff]
    %v116 = vld [vmem:[%s0 + $0x48] sm:$0xff]
    %v117 = vld [vmem:[%s0 + $0x50] sm:$0xff]
    %v118 = vld [vmem:[%s0 + $0x58] sm:$0xff]
    %v119 = vld [vmem:[%s0 + $0x60] sm:$0xff]
    %v120 = vld [vmem:[%s0 + $0x68] sm:$0xff]
    %v121 = vld [vmem:[%s0 + $0x70] sm:$0xff]
    %v122 = vld [vmem:[%s0 + $0x78] sm:$0xff]
    %v124 = vsel %vm33, %v104, 0
    %v127 = vsel %vm33, %v107, 0
    %v130 = vsel %vm33, %v108, 0
    %v133 = vsel %vm33, %v109, 0
    %v136 = vsel %vm33, %v110, 0
    %v139 = vsel %vm33, %v111, 0
    %v142 = vsel %vm33, %v112, 0
    %v145 = vsel %vm33, %v113, 0
    %v148 = vsel %vm33, %v114, 0
    %v151 = vsel %vm33, %v115, 0
    %v154 = vsel %vm33, %v116, 0
    %v157 = vsel %vm33, %v117, 0
    %v160 = vsel %vm33, %v118, 0
    %v163 = vsel %vm33, %v119, 0
    %v166 = vsel %vm33, %v120, 0
    %v169 = vsel %vm33, %v121, 0
    %v172 = vsel %vm33, %v122, 0
    %174 = vmatprep.subr.mxu0 0.0
    %175 = vmatpush1.xpose.msra.mxu0 %v127
    %176 = vmatprep.subr.mxu0 0.0
    %177 = vmatpush1.xpose.msra.mxu0 %v130
    %178 = vmatprep.subr.mxu0 0.0
    %179 = vmatpush1.xpose.msra.mxu0 %v133
    %180 = vmatprep.subr.mxu0 0.0
    %181 = vmatpush1.xpose.msra.mxu0 %v136
    %182 = vmatprep.subr.mxu0 0.0
    %183 = vmatpush1.xpose.msra.mxu0 %v139
    %184 = vmatprep.subr.mxu0 0.0
    %185 = vmatpush1.xpose.msra.mxu0 %v142
    %186 = vmatprep.subr.mxu0 0.0
    %187 = vmatpush1.xpose.msra.mxu0 %v145
    %188 = vmatprep.subr.mxu0 0.0
    %189 = vmatpush1.xpose.msra.mxu0 %v148
    %190 = vmatprep.subr.mxu0 0.0
    %191 = vmatpush1.xpose.msra.mxu0 %v151
    %192 = vmatprep.subr.mxu0 0.0
    %193 = vmatpush1.xpose.msra.mxu0 %v154
    %194 = vmatprep.subr.mxu0 0.0
    %195 = vmatpush1.xpose.msra.mxu0 %v157
    %196 = vmatprep.subr.mxu0 0.0
    %197 = vmatpush1.xpose.msra.mxu0 %v160
    %198 = vmatprep.subr.mxu0 0.0
    %199 = vmatpush1.xpose.msra.mxu0 %v163
    %200 = vmatprep.subr.mxu0 0.0
    %201 = vmatpush1.xpose.msra.mxu0 %v166
    %202 = vmatprep.subr.mxu0 0.0
    %203 = vmatpush1.xpose.msra.mxu0 %v169
    %204 = vmatprep.subr.mxu0 0.0
    %205 = vmatpush1.xpose.msra.mxu0 %v172
    %206 = vmatprep.subr.mxu0 0.0
    %207 = vmatpush1.xpose.msra.mxu0 0.0
    %208 = vmatprep.subr.mxu0 0.0
    %209 = vmatpush1.xpose.msra.mxu0 0.0
    %210 = vmatprep.subr.mxu0 0.0
    %211 = vmatpush1.xpose.msra.mxu0 0.0
    %212 = vmatprep.subr.mxu0 0.0
    %213 = vmatpush1.xpose.msra.mxu0 0.0
    %214 = vmatprep.subr.mxu0 0.0
    %215 = vmatpush1.xpose.msra.mxu0 0.0
    %216 = vmatprep.subr.mxu0 0.0
    %217 = vmatpush1.xpose.msra.mxu0 0.0
    %218 = vmatprep.subr.mxu0 0.0
    %219 = vmatpush1.xpose.msra.mxu0 0.0
    %220 = vmatprep.subr.mxu0 0.0
    %221 = vmatpush1.xpose.msra.mxu0 0.0
    %222 = vmatprep.subr.mxu0 0.0
    %223 = vmatpush1.xpose.msra.mxu0 0.0
    %224 = vmatprep.subr.mxu0 0.0
    %225 = vmatpush1.xpose.msra.mxu0 0.0
    %226 = vmatprep.subr.mxu0 0.0
    %227 = vmatpush1.xpose.msra.mxu0 0.0
    %228 = vmatprep.subr.mxu0 0.0
    %229 = vmatpush1.xpose.msra.mxu0 0.0
    %230 = vmatprep.subr.mxu0 0.0
    %231 = vmatpush1.xpose.msra.mxu0 0.0
    %232 = vmatprep.subr.mxu0 0.0
    %233 = vmatpush1.xpose.msra.mxu0 0.0
    %234 = vmatprep.subr.mxu0 0.0
    %235 = vmatpush1.xpose.msra.mxu0 0.0
    %236 = vmatprep.subr.mxu0 0.0
    %237 = vmatpush1.xpose.msra.mxu0 0.0
    %238 = vmatprep.mubr.f32.mxu0 0.0
    %239 = vmatmul.mubr.f32.gmra.mrb[0].mxu0 %v124
    %v240 = vpop.f32.mrb[0].mxu0
    %v241 = vadd.f32 0.0, %v240
    %v242 = vpop.f32.mrb[0].mxu0
    %243 = vdwg.mxu0
    %244 = vst [vmem:[#allocation2] sm:$0xff] %v241
    %s245 = scalar_lea.vmem %s1, 8
    %v246 = vld [vmem:[%s245] sm:$0xff]
    %v247 = vld [vmem:[%s3] sm:$0xff]
    %v248 = vld [vmem:[%s3 + $0x8] sm:$0xff]
    %v249 = vld [vmem:[%s3 + $0x10] sm:$0xff]
    %v250 = vld [vmem:[%s3 + $0x18] sm:$0xff]
    %v251 = vld [vmem:[%s4] sm:$0x1]
    %v253 = vlaneseq
    %v254 = vshrl.u32 %v253, 7
    %v255 = vsub.s32 0, %v254
    %v256 = vrot.slane %v251, %v255
    %v259 = vsel %vm33, %v246, 0
    %261 = vmatprep.subr.mxu0 0.0
    %262 = vmatpush1.msra.mxu0 %v247
    %263 = vmatprep.subr.mxu0 0.0
    %264 = vmatpush1.msra.mxu0 %v248
    %265 = vmatprep.subr.mxu0 0.0
    %266 = vmatpush1.msra.mxu0 %v249
    %267 = vmatprep.subr.mxu0 0.0
    %268 = vmatpush1.msra.mxu0 %v250
    %269 = vmatprep.subr.mxu0 0.0
    %270 = vmatpush1.msra.mxu0 0.0
    %271 = vmatprep.subr.mxu0 0.0
    %272 = vmatpush1.msra.mxu0 0.0
    %273 = vmatprep.subr.mxu0 0.0
    %274 = vmatpush1.msra.mxu0 0.0
    %275 = vmatprep.subr.mxu0 0.0
    %276 = vmatpush1.msra.mxu0 0.0
    %277 = vmatprep.subr.mxu0 0.0
    %278 = vmatpush1.msra.mxu0 0.0
    %279 = vmatprep.subr.mxu0 0.0
    %280 = vmatpush1.msra.mxu0 0.0
    %281 = vmatprep.subr.mxu0 0.0
    %282 = vmatpush1.msra.mxu0 0.0
    %283 = vmatprep.subr.mxu0 0.0
    %284 = vmatpush1.msra.mxu0 0.0
    %285 = vmatprep.subr.mxu0 0.0
    %286 = vmatpush1.msra.mxu0 0.0
    %287 = vmatprep.subr.mxu0 0.0
    %288 = vmatpush1.msra.mxu0 0.0
    %289 = vmatprep.subr.mxu0 0.0
    %290 = vmatpush1.msra.mxu0 0.0
    %291 = vmatprep.subr.mxu0 0.0
    %292 = vmatpush1.msra.mxu0 0.0
    %293 = vmatprep.subr.mxu0 0.0
    %294 = vmatpush1.msra.mxu0 0.0
    %295 = vmatprep.subr.mxu0 0.0
    %296 = vmatpush1.msra.mxu0 0.0
    %297 = vmatprep.subr.mxu0 0.0
    %298 = vmatpush1.msra.mxu0 0.0
    %299 = vmatprep.subr.mxu0 0.0
    %300 = vmatpush1.msra.mxu0 0.0
    %301 = vmatprep.subr.mxu0 0.0
    %302 = vmatpush1.msra.mxu0 0.0
    %303 = vmatprep.subr.mxu0 0.0
    %304 = vmatpush1.msra.mxu0 0.0
    %305 = vmatprep.subr.mxu0 0.0
    %306 = vmatpush1.msra.mxu0 0.0
    %307 = vmatprep.subr.mxu0 0.0
    %308 = vmatpush1.msra.mxu0 0.0
    %309 = vmatprep.subr.mxu0 0.0
    %310 = vmatpush1.msra.mxu0 0.0
    %311 = vmatprep.subr.mxu0 0.0
    %312 = vmatpush1.msra.mxu0 0.0
    %313 = vmatprep.subr.mxu0 0.0
    %314 = vmatpush1.msra.mxu0 0.0
    %315 = vmatprep.subr.mxu0 0.0
    %316 = vmatpush1.msra.mxu0 0.0
    %317 = vmatprep.subr.mxu0 0.0
    %318 = vmatpush1.msra.mxu0 0.0
    %319 = vmatprep.subr.mxu0 0.0
    %320 = vmatpush1.msra.mxu0 0.0
    %321 = vmatprep.subr.mxu0 0.0
    %322 = vmatpush1.msra.mxu0 0.0
    %323 = vmatprep.subr.mxu0 0.0
    %324 = vmatpush1.msra.mxu0 0.0
    %325 = vmatprep.mubr.f32.mxu0 0.0
    %326 = vmatmul.mubr.f32.gmra.mrb[0].mxu0 %v259
    %v327 = vpop.f32.mrb[0].mxu0
    %v328 = vadd.f32 %v256, %v327
    %v329 = vpop.f32.mrb[0].mxu0
    %330 = vdwg.mxu0
    %s331 = scalar_lea.vmem %s0, 128
    %v332 = vld [vmem:[%s331] sm:$0xff]
    %v333 = vld [vmem:[%s331 + $0x8] sm:$0xff]
    %v334 = vld [vmem:[%s331 + $0x10] sm:$0xff]
    %v335 = vld [vmem:[%s331 + $0x18] sm:$0xff]
    %v336 = vld [vmem:[%s331 + $0x20] sm:$0xff]
    %v337 = vld [vmem:[%s331 + $0x28] sm:$0xff]
    %v338 = vld [vmem:[%s331 + $0x30] sm:$0xff]
    %v339 = vld [vmem:[%s331 + $0x38] sm:$0xff]
    %v340 = vld [vmem:[%s331 + $0x40] sm:$0xff]
    %v341 = vld [vmem:[%s331 + $0x48] sm:$0xff]
    %v342 = vld [vmem:[%s331 + $0x50] sm:$0xff]
    %v343 = vld [vmem:[%s331 + $0x58] sm:$0xff]
    %v344 = vld [vmem:[%s331 + $0x60] sm:$0xff]
    %v345 = vld [vmem:[%s331 + $0x68] sm:$0xff]
    %v346 = vld [vmem:[%s331 + $0x70] sm:$0xff]
    %v347 = vld [vmem:[%s331 + $0x78] sm:$0xff]
    %v349 = vsel %vm33, %v328, 0
    %v352 = vsel %vm33, %v332, 0
    %v355 = vsel %vm33, %v333, 0
    %v358 = vsel %vm33, %v334, 0
    %v361 = vsel %vm33, %v335, 0
    %v364 = vsel %vm33, %v336, 0
    %v367 = vsel %vm33, %v337, 0
    %v370 = vsel %vm33, %v338, 0
    %v373 = vsel %vm33, %v339, 0
    %v376 = vsel %vm33, %v340, 0
    %v379 = vsel %vm33, %v341, 0
    %v382 = vsel %vm33, %v342, 0
    %v385 = vsel %vm33, %v343, 0
    %v388 = vsel %vm33, %v344, 0
    %v391 = vsel %vm33, %v345, 0
    %v394 = vsel %vm33, %v346, 0
    %v397 = vsel %vm33, %v347, 0
    %399 = vmatprep.subr.mxu0 0.0
    %400 = vmatpush1.xpose.msra.mxu0 %v352
    %401 = vmatprep.subr.mxu0 0.0
    %402 = vmatpush1.xpose.msra.mxu0 %v355
    %403 = vmatprep.subr.mxu0 0.0
    %404 = vmatpush1.xpose.msra.mxu0 %v358
    %405 = vmatprep.subr.mxu0 0.0
    %406 = vmatpush1.xpose.msra.mxu0 %v361
    %407 = vmatprep.subr.mxu0 0.0
    %408 = vmatpush1.xpose.msra.mxu0 %v364
    %409 = vmatprep.subr.mxu0 0.0
    %410 = vmatpush1.xpose.msra.mxu0 %v367
    %411 = vmatprep.subr.mxu0 0.0
    %412 = vmatpush1.xpose.msra.mxu0 %v370
    %413 = vmatprep.subr.mxu0 0.0
    %414 = vmatpush1.xpose.msra.mxu0 %v373
    %415 = vmatprep.subr.mxu0 0.0
    %416 = vmatpush1.xpose.msra.mxu0 %v376
    %417 = vmatprep.subr.mxu0 0.0
    %418 = vmatpush1.xpose.msra.mxu0 %v379
    %419 = vmatprep.subr.mxu0 0.0
    %420 = vmatpush1.xpose.msra.mxu0 %v382
    %421 = vmatprep.subr.mxu0 0.0
    %422 = vmatpush1.xpose.msra.mxu0 %v385
    %423 = vmatprep.subr.mxu0 0.0
    %424 = vmatpush1.xpose.msra.mxu0 %v388
    %425 = vmatprep.subr.mxu0 0.0
    %426 = vmatpush1.xpose.msra.mxu0 %v391
    %427 = vmatprep.subr.mxu0 0.0
    %428 = vmatpush1.xpose.msra.mxu0 %v394
    %429 = vmatprep.subr.mxu0 0.0
    %430 = vmatpush1.xpose.msra.mxu0 %v397
    %431 = vmatprep.subr.mxu0 0.0
    %432 = vmatpush1.xpose.msra.mxu0 0.0
    %433 = vmatprep.subr.mxu0 0.0
    %434 = vmatpush1.xpose.msra.mxu0 0.0
    %435 = vmatprep.subr.mxu0 0.0
    %436 = vmatpush1.xpose.msra.mxu0 0.0
    %437 = vmatprep.subr.mxu0 0.0
    %438 = vmatpush1.xpose.msra.mxu0 0.0
    %439 = vmatprep.subr.mxu0 0.0
    %440 = vmatpush1.xpose.msra.mxu0 0.0
    %441 = vmatprep.subr.mxu0 0.0
    %442 = vmatpush1.xpose.msra.mxu0 0.0
    %443 = vmatprep.subr.mxu0 0.0
    %444 = vmatpush1.xpose.msra.mxu0 0.0
    %445 = vmatprep.subr.mxu0 0.0
    %446 = vmatpush1.xpose.msra.mxu0 0.0
    %447 = vmatprep.subr.mxu0 0.0
    %448 = vmatpush1.xpose.msra.mxu0 0.0
    %449 = vmatprep.subr.mxu0 0.0
    %450 = vmatpush1.xpose.msra.mxu0 0.0
    %451 = vmatprep.subr.mxu0 0.0
    %452 = vmatpush1.xpose.msra.mxu0 0.0
    %453 = vmatprep.subr.mxu0 0.0
    %454 = vmatpush1.xpose.msra.mxu0 0.0
    %455 = vmatprep.subr.mxu0 0.0
    %456 = vmatpush1.xpose.msra.mxu0 0.0
    %457 = vmatprep.subr.mxu0 0.0
    %458 = vmatpush1.xpose.msra.mxu0 0.0
    %459 = vmatprep.subr.mxu0 0.0
    %460 = vmatpush1.xpose.msra.mxu0 0.0
    %461 = vmatprep.subr.mxu0 0.0
    %462 = vmatpush1.xpose.msra.mxu0 0.0
    %463 = vmatprep.mubr.f32.mxu0 0.0
    %464 = vmatmul.mubr.f32.gmra.mrb[0].mxu0 %v349
    %v465 = vpop.f32.mrb[0].mxu0
    %v466 = vadd.f32 0.0, %v465
    %v467 = vpop.f32.mrb[0].mxu0
    %468 = vdwg.mxu0
    %s469 = scalar_lea.vmem [#allocation2], 8
    %470 = vst [vmem:[%s469] sm:$0xff] %v466
    %v471 = vld [vmem:[#allocation2] sm:$0xff]
    %v472 = vld [vmem:[#allocation2 + $0x8] sm:$0xff]
    %v473 = vld [vmem:[%s2] sm:$0x1]
    %v474 = vld [vmem:[%s2 + $0x1] sm:$0x1]
    %v477 = vlaneseq
    %v478 = vshrl.u32 %v477, 7
    %v479 = vsub.s32 0, %v478
    %v480 = vrot.slane %v473, %v479
    %v481 = vlaneseq
    %v482 = vshrl.u32 %v481, 7
    %v483 = vsub.s32 0, %v482
    %v484 = vrot.slane %v474, %v483
    %v487 = vadd.f32 %v471, %v480
    %v488 = vadd.f32 %v472, %v484
    %489 = vmax.xlane.f32.xlu0 %v487
    %v490 = vpop.xlane.xlu0 %489
    %491 = vmax.xlane.f32.xlu0 %v488
    %v492 = vpop.xlane.xlu0 %491
    %v493 = vsub.f32 %v487, %v490
    %v494 = vsub.f32 %v488, %v492
    %v495 = vmul.f32 %v493, 1.442695
    %v496 = vpow.pop %v495
    %v497 = vmul.f32 %v494, 1.442695
    %v498 = vpow.pop %v497
    %499 = vadd.xlane.f32.xlu0 %v496
    %v500 = vpop.xlane.xlu0 %499
    %501 = vadd.xlane.f32.xlu0 %v498
    %v502 = vpop.xlane.xlu0 %501
    %v503 = vrcp.pop %v500
    %v504 = vrcp.pop %v502
    %v505 = vmul.f32 %v496, %v503
    %v506 = vmul.f32 %v498, %v504
    %507 = vst [vmem:[#allocation3] sm:$0xff] %v505
    %508 = vst [vmem:[#allocation3 + $0x8] sm:$0xff] %v506
    // Predicated region
    $region22: #{tpu_custom_call.1} parent=1 // pred_check
      _
    $region23: #{tpu_custom_call.1} parent=1 // pred_check_branch
      %510 = sbr.rel (0) target = $region25
    $region24: #{tpu_custom_call.1} parent=1 // pred_region
      %s512 = ssub.s32 256, 256
      %513 = vsyncadd [#allocation4], %s512
      %s514 = sshll.u32 [#allocation3], 4
      %s515 = int_to_ptr.vmem [resolvable:$true] %s514
      %520 = dma.vmem_to_hbm [thread:$0]  %s515, 256, %s5, [#allocation4], 128, 128, 8
    $region25: #{tpu_custom_call.1} parent=1 // pred_fallthru
      _
    // Predicated region
    $region26: #{tpu_custom_call.1} parent=1 // pred_check
      _
    $region27: #{tpu_custom_call.1} parent=1 // pred_check_branch
      %522 = sbr.rel (0) target = $region29
    $region28: #{tpu_custom_call.1} parent=1 // pred_region
      %523 = dma.done [#allocation4], 256
    $region29: #{tpu_custom_call.1} parent=1 // pred_fallthru
      _
    %524 = vsyncpa [#allocation4], 1

</llo_original>
